<compile_context>
chip_gen: v7x
topology: tpu7x:2x2x1
jax: 0.10.0
libtpu: 0.0.40
codegen_flags: <defaults>
</compile_context>

<pallas_src>
import jax
import jax.numpy as jnp
from jax.experimental import pallas as pl
from jax.experimental.pallas import tpu as pltpu


def _hstep_kernel(x_ref, thresh_ref, o_ref):
    # thresh.relu() -> clamp at 0 (free VPU work under the mem-bound regime)
    t = jnp.maximum(thresh_ref[...], jnp.zeros((), thresh_ref.dtype))  # (1, tf)
    # single bool->dtype VPU cast; (1, tf) broadcasts over the batch tile
    o_ref[...] = (x_ref[...] > t).astype(o_ref.dtype)


def hstep(x, thresh, *, tile_bytes=4 << 20, vmem_limit_bytes=48 << 20):
    """Pallas TPU implementation of HStep.forward.

    x:      [B, F]
    thresh: [F]   (learned per-feature threshold; relu'd inside the kernel)
    returns [B, F] with dtype of x, values in {0, 1}.
    """
    B, F = x.shape
    assert thresh.shape == (F,)

    itemsize = jnp.dtype(x.dtype).itemsize
    lane = 128
    # native sublane packing: 8 rows for 32-bit, 16 for 16-bit, 32 for 8-bit
    sublane = {4: 8, 2: 16, 1: 32}.get(itemsize, 8)

    # --- feature tile: full F if one row fits in the byte budget, else 128-aligned chunk
    if F * itemsize <= tile_bytes:
        tf = F
    else:
        tf = max(lane, (tile_bytes // itemsize) // lane * lane)
        tf = min(tf, ((F + lane - 1) // lane) * lane)

    # --- batch tile: ~tile_bytes of x per grid step, rounded to sublane packing
    row_bytes = tf * itemsize
    tb = max(sublane, (tile_bytes // row_bytes) // sublane * sublane)
    tb = min(tb, ((B + sublane - 1) // sublane) * sublane)

    # --- pad so the grid divides evenly (ragged shapes via pad + slice)
    Bp = ((B + tb - 1) // tb) * tb
    Fp = ((F + tf - 1) // tf) * tf

    x_in = x
    if Bp != B or Fp != F:
        x_in = jnp.pad(x, ((0, Bp - B), (0, Fp - F)))
    thresh2d = thresh.reshape(1, F)
    if Fp != F:
        thresh2d = jnp.pad(thresh2d, ((0, 0), (0, Fp - F)))

    n_f = Fp // tf
    n_b = Bp // tb

    out = pl.pallas_call(
        _hstep_kernel,
        out_shape=jax.ShapeDtypeStruct((Bp, Fp), x.dtype),
        grid_spec=pltpu.PrefetchScalarGridSpec(
            num_scalar_prefetch=0,
            # feature tiles outer, batch tiles inner -> thresh block resident
            # across the whole inner batch loop.
            grid=(n_f, n_b),
            in_specs=[
                pl.BlockSpec((tb, tf), lambda j, i: (i, j)),  # x tile
                pl.BlockSpec((1, tf), lambda j, i: (0, j)),   # thresh (per-feature)
            ],
            out_specs=pl.BlockSpec((tb, tf), lambda j, i: (i, j)),
        ),
        compiler_params=pltpu.CompilerParams(
            dimension_semantics=("parallel", "parallel"),  # megacore sharding on v7x
            vmem_limit_bytes=vmem_limit_bytes,
        ),
    )(x_in, thresh2d)

    if Bp != B or Fp != F:
        out = out[:B, :F]
    return out


def _ref_hstep(x, thresh):
    return jnp.where(x > jnp.maximum(thresh, 0.0)[None, :], 1, 0).astype(x.dtype)


if __name__ == "__main__":
    key = jax.random.PRNGKey(0)
    k_x, k_t, k_x2, k_x3, k_t3 = jax.random.split(key, 5)

    # small demo shapes consistent with the module: [batch, features]
    B, F = 8, 256
    x = jax.random.normal(k_x, (B, F), dtype=jnp.float32)
    # deterministic "parameter" init for thresh (includes negatives to exercise relu)
    thresh = jax.random.normal(k_t, (F,), dtype=jnp.float32) * 0.1

    out = jax.block_until_ready(hstep(x, thresh))
    ref = _ref_hstep(x, thresh)
    assert out.shape == (B, F) and out.dtype == x.dtype
    assert bool(jnp.all(out == ref))

    # sub-32-bit (sublane-packed) path + ragged batch padding
    B2 = 20  # not a multiple of the bf16 sublane packing (16)
    x_bf16 = jax.random.normal(k_x2, (B2, F), dtype=jnp.bfloat16)
    out2 = jax.block_until_ready(hstep(x_bf16, thresh))
    ref2 = _ref_hstep(x_bf16, thresh)
    assert out2.shape == (B2, F) and out2.dtype == x_bf16.dtype
    assert bool(jnp.all(out2 == ref2))

    # feature-tiled + ragged-feature path (tiny tile_bytes forces F tiling + padding)
    B3, F3 = 8, 300
    x3 = jax.random.normal(k_x3, (B3, F3), dtype=jnp.float32)
    thresh3 = jax.random.normal(k_t3, (F3,), dtype=jnp.float32) * 0.1
    out3 = jax.block_until_ready(hstep(x3, thresh3, tile_bytes=1 << 10))
    ref3 = _ref_hstep(x3, thresh3)
    assert out3.shape == (B3, F3) and out3.dtype == x3.dtype
    assert bool(jnp.all(out3 == ref3))

    print("KERNEL_OK")
</pallas_src>

<mosaic_0001>
module attributes {stable_mosaic.version = 11 : i64} {
  func.func @_hstep_kernel(%arg0: i32, %arg1: i32, %arg2: memref<8x256xf32, #tpu.memory_space<vmem>>, %arg3: memref<1x256xf32, #tpu.memory_space<vmem>>, %arg4: memref<8x256xf32, #tpu.memory_space<vmem>>) attributes {dimension_semantics = [#tpu.dimension_semantics<parallel>, #tpu.dimension_semantics<parallel>], iteration_bounds = array<i64: 1, 1>, scalar_prefetch = 0 : i64, scratch_operands = 0 : i64, tpu.core_type = #tpu.core_type<tc>, window_params = [{transform_indices = @transform_0, window_bounds = array<i64: 8, 256>}, {transform_indices = @transform_1, window_bounds = array<i64: 1, 256>}, {transform_indices = @transform_2, window_bounds = array<i64: 8, 256>}]} {
    %c0 = arith.constant 0 : index
    %c0_0 = arith.constant 0 : index
    %0 = vector.load %arg3[%c0, %c0_0] : memref<1x256xf32, #tpu.memory_space<vmem>>, vector<1x256xf32>
    %cst = arith.constant 0.000000e+00 : f32
    %1 = vector.broadcast %cst : f32 to vector<1x256xf32>
    %2 = arith.maximumf %0, %1 : vector<1x256xf32>
    %c0_1 = arith.constant 0 : index
    %c0_2 = arith.constant 0 : index
    %3 = vector.load %arg2[%c0_1, %c0_2] : memref<8x256xf32, #tpu.memory_space<vmem>>, vector<8x256xf32>
    %4 = vector.broadcast %2 : vector<1x256xf32> to vector<8x256xf32>
    %5 = arith.cmpf ogt, %3, %4 : vector<8x256xf32>
    %6 = arith.extui %5 : vector<8x256xi1> to vector<8x256xi32>
    %7 = arith.sitofp %6 : vector<8x256xi32> to vector<8x256xf32>
    %c0_3 = arith.constant 0 : index
    %c0_4 = arith.constant 0 : index
    %8 = vector.load %arg4[%c0_3, %c0_4] : memref<8x256xf32, #tpu.memory_space<vmem>>, vector<8x256xf32>
    tpu.vector_store %arg4[%c0_3, %c0_4], %7 {strides = array<i32>} : memref<8x256xf32, #tpu.memory_space<vmem>>, vector<8x256xf32>,
    return
  }
  func.func @transform_0(%arg0: i32, %arg1: i32) -> (i32, i32) {
    %c0_i32 = arith.constant 0 : i32
    return %arg1, %arg0 : i32, i32
  }
  func.func @transform_1(%arg0: i32, %arg1: i32) -> (i32, i32) {
    %c0_i32 = arith.constant 0 : i32
    %c0_i32_0 = arith.constant 0 : i32
    return %c0_i32, %arg0 : i32, i32
  }
  func.func @transform_2(%arg0: i32, %arg1: i32) -> (i32, i32) {
    %c0_i32 = arith.constant 0 : i32
    return %arg1, %arg0 : i32, i32
  }
}

</mosaic_0001>

<llo_original>
// kernel: tpu_custom_call.1
$region0: #{tpu_custom_call.1}
  #allocation0 [shape = 'u32[]', space=smem, size = 0x4, offset = 0x4, fixed_abs, tag = 'smem constant byte address 0x4 - core index']
  #allocation1 [shape = 'u32[144,128]{1,0:T(1,128)}', space=vmem, size = 0x12000, scoped, tag = 'internal scratch']
  %s0 = inlined_call_operand.hbm [shape: f32[8,256], index: 0, kind: input, shape index: {}]
  %s1 = inlined_call_operand.vmem [shape: f32[1,256], index: 1, kind: input, shape index: {}]
  %s2 = inlined_call_operand.hbm [shape: f32[8,256], index: 2, kind: output, shape index: {}]
  %s3 = sld [smem:[#allocation0]]
  $region22: #{tpu_custom_call.1} parent=0
    _
  %s5 = ssub.s32 1, %s3
  %s6 = scalar_select 0, %s5, %s3
  $region1: #{tpu_custom_call.1} parent=0
    #allocation2 [shape = 'u8[8192]{0}', space=vmem, size = 0x2000, scoped, tag = 'input window, operand 0, single buffered']
    #allocation3 [shape = 's32[1]{0}', space=sflag, size = 0x4, scoped, tag = 'scoped memory for tpu_custom_call.1']
    #allocation4 [shape = 's32[1]{0}', space=sflag, size = 0x4, scoped, tag = 'scoped memory for tpu_custom_call.1']
    #allocation5 [shape = 'u8[8192]{0}', space=vmem, size = 0x2000, scoped, tag = 'output window, operand 0, single buffered']
    %7 = vsyncpa [#allocation3], 0
    %8 = vsyncpa [#allocation4], 0
    // Predicated region
    $region2: #{tpu_custom_call.1} parent=1 // pred_check
      _
    $region3: #{tpu_custom_call.1} parent=1 // pred_check_branch
      %10 = sbr.rel (0) target = $region5
    $region4: #{tpu_custom_call.1} parent=1 // pred_region
      %s12 = ssub.s32 256, 256
      %13 = vsyncadd [#allocation3], %s12
      %s15 = sshll.u32 [#allocation2], 4
      %s16 = int_to_ptr.vmem [resolvable:$true] %s15
      %18 = dma.hbm_to_vmem [thread:$0]  %s0, 256, %s16, [#allocation3]
    $region5: #{tpu_custom_call.1} parent=1 // pred_fallthru
      _
    // Predicated region
    $region6: #{tpu_custom_call.1} parent=1 // pred_check
      _
    $region7: #{tpu_custom_call.1} parent=1 // pred_check_branch
      %20 = sbr.rel (0) target = $region9
    $region8: #{tpu_custom_call.1} parent=1 // pred_region
      _
    $region9: #{tpu_custom_call.1} parent=1 // pred_fallthru
      _
    // Predicated region
    $region10: #{tpu_custom_call.1} parent=1 // pred_check
      _
    $region11: #{tpu_custom_call.1} parent=1 // pred_check_branch
      %22 = sbr.rel (0) target = $region13
    $region12: #{tpu_custom_call.1} parent=1 // pred_region
      %23 = dma.done [#allocation3], 256
    $region13: #{tpu_custom_call.1} parent=1 // pred_fallthru
      _
    %v24 = vld [vmem:[%s1] sm:$0x3]
    %v25 = vmax.f32 %v24, 0.0
    %v26 = vld [vmem:[#allocation2] sm:$0xff]
    %v27 = vld [vmem:[#allocation2 + $0x8] sm:$0xff]
    %v29 = vlaneseq
    %v30 = vshrl.u32 %v29, 7
    %v31 = vsub.s32 0, %v30
    %v32 = vrot.slane %v25, %v31
    %v33 = vlaneseq
    %v34 = vshrl.u32 %v33, 7
    %v35 = vsub.s32 1, %v34
    %v36 = vrot.slane %v25, %v35
    %vm39 = vcmp.gt.f32.partialorder %v26, %v32
    %vm40 = vcmp.gt.f32.partialorder %v27, %v36
    %v41 = vsel %vm39, 1, 0
    %v42 = vsel %vm40, 1, 0
    %v43 = vcvt.s32.f32 %v41
    %v44 = vcvt.s32.f32 %v42
    %45 = vst [vmem:[#allocation5] sm:$0xff] %v43
    %46 = vst [vmem:[#allocation5 + $0x8] sm:$0xff] %v44
    // Predicated region
    $region14: #{tpu_custom_call.1} parent=1 // pred_check
      _
    $region15: #{tpu_custom_call.1} parent=1 // pred_check_branch
      %48 = sbr.rel (0) target = $region17
    $region16: #{tpu_custom_call.1} parent=1 // pred_region
      %s50 = ssub.s32 256, 256
      %51 = vsyncadd [#allocation4], %s50
      %s53 = sshll.u32 [#allocation5], 4
      %s54 = int_to_ptr.vmem [resolvable:$true] %s53
      %56 = dma.vmem_to_hbm [thread:$0]  %s54, 256, %s2, [#allocation4]
    $region17: #{tpu_custom_call.1} parent=1 // pred_fallthru
      _
    // Predicated region
    $region18: #{tpu_custom_call.1} parent=1 // pred_check
      _
    $region19: #{tpu_custom_call.1} parent=1 // pred_check_branch
      %58 = sbr.rel (0) target = $region21
    $region20: #{tpu_custom_call.1} parent=1 // pred_region
      %59 = dma.done [#allocation4], 256
    $region21: #{tpu_custom_call.1} parent=1 // pred_fallthru
      _
    %60 = vsyncpa [#allocation3], 1
    %61 = vsyncpa [#allocation4], 1

</llo_original>
